<compile_context>
chip_gen: v5e
topology: v5e:2x2
jax: 0.10.0
libtpu: 0.0.40
codegen_flags: <defaults>
</compile_context>

<pallas_src>
import numpy as np
import jax
import jax.numpy as jnp
from jax.experimental import pallas as pl
from jax.experimental.pallas import tpu as pltpu


def _round_up(x, m):
    return (x + m - 1) // m * m


def _submconv_matmul_kernel(g_ref, w_ref, b_ref, o_ref):
    # g_ref: (tile_m, RSC) bf16 gathered neighbor features for one tile of active sites
    # w_ref: (RSC, Kp)     bf16 reshaped weight (K zero-padded to lane-dense Kp)
    # b_ref: (1, Kp)       f32 bias row
    # o_ref: (tile_m, Kp)  f32 output tile
    acc = jnp.dot(g_ref[...], w_ref[...], preferred_element_type=jnp.float32)
    o_ref[...] = (acc + b_ref[...]).astype(o_ref.dtype)


def submconv2d_pallas(features, indices, H, W, batch_size, weight, bias,
                      stride=(1, 1), padding=(0, 0), dilation=(1, 1),
                      tile_m=512, compute_dtype=jnp.bfloat16):
    """SubMConv2d forward.

    features: [N, C] float32, indices: [N, 3] int32 (b, y, x).
    weight:   [K, R, S, C] (same layout as the PyTorch module), bias: [K] or None.
    Returns (out_features [N, K] float32, out_indices [N, 3], P, Q).
    """
    K, R, S, C = weight.shape
    str_h, str_w = stride
    pad_h, pad_w = padding
    dil_h, dil_w = dilation
    N = features.shape[0]
    RS = R * S
    RSC = RS * C

    # Output spatial shape (standard conv formula). For canonical SubMConv
    # (stride=1, pad=dil*(k-1)//2) this equals (H, W); output coords == input coords.
    P = (H + 2 * pad_h - dil_h * (R - 1) - 1) // str_h + 1
    Q = (W + 2 * pad_w - dil_w * (S - 1) - 1) // str_w + 1

    # ---- rulebook: [N, R*S] neighbor row ids; value N means "missing" -> zero row ----
    table = jnp.full((batch_size, H, W), N, dtype=jnp.int32)
    table = table.at[indices[:, 0], indices[:, 1], indices[:, 2]].set(
        jnp.arange(N, dtype=jnp.int32))

    b_idx = indices[:, 0][:, None, None]                                   # (N,1,1)
    h_in = (indices[:, 1][:, None, None] * str_h - pad_h
            + (jnp.arange(R, dtype=jnp.int32) * dil_h)[None, :, None])     # (N,R,1)
    w_in = (indices[:, 2][:, None, None] * str_w - pad_w
            + (jnp.arange(S, dtype=jnp.int32) * dil_w)[None, None, :])     # (N,1,S)
    in_bounds = (h_in >= 0) & (h_in < H) & (w_in >= 0) & (w_in < W)        # (N,R,S)
    nbr = table[b_idx, jnp.clip(h_in, 0, H - 1), jnp.clip(w_in, 0, W - 1)]  # (N,R,S)
    # ordering (r*S + s) matches weight.transpose(1,2,3,0).reshape(RSC, K)
    rulebook = jnp.where(in_bounds, nbr, N).reshape(N, RS)

    # ---- single vectorized gather, in compute dtype, produced already tile-padded ----
    tile_m = min(tile_m, _round_up(max(N, 8), 8))   # don't over-pad tiny inputs
    Mpad = _round_up(N, tile_m)
    rulebook = jnp.pad(rulebook, ((0, Mpad - N), (0, 0)), constant_values=N)
    feat_tbl = jnp.concatenate(
        [features.astype(compute_dtype),
         jnp.zeros((1, C), dtype=compute_dtype)], axis=0)                  # row N == zeros
    gathered = jnp.take(feat_tbl, rulebook, axis=0).reshape(Mpad, RSC)     # [Mpad, RSC] bf16

    # ---- weight / bias: lane-dense K (multiple of 128), bias kept in f32 ----
    Kp = _round_up(K, 128)
    w_mat = jnp.transpose(weight, (1, 2, 3, 0)).reshape(RSC, K).astype(compute_dtype)
    w_mat = jnp.pad(w_mat, ((0, 0), (0, Kp - K)))
    if bias is None:
        bias_row = jnp.zeros((1, Kp), dtype=jnp.float32)
    else:
        bias_row = jnp.pad(bias.astype(jnp.float32).reshape(1, K),
                           ((0, 0), (0, Kp - K)))

    num_tiles = Mpad // tile_m
    if num_tiles >= 3:
        # Deeper buffering on the streamed LHS: mainly helps v5e's lower HBM bandwidth.
        lhs_spec = pl.BlockSpec((tile_m, RSC), lambda i: (i, 0),
                                pipeline_mode=pl.Buffered(3))
    else:
        lhs_spec = pl.BlockSpec((tile_m, RSC), lambda i: (i, 0))

    # ---- hot path: Pallas MXU matmul over active-site tiles ----
    out_padded = pl.pallas_call(
        _submconv_matmul_kernel,
        out_shape=jax.ShapeDtypeStruct((Mpad, Kp), jnp.float32),
        grid_spec=pltpu.PrefetchScalarGridSpec(
            num_scalar_prefetch=0,
            grid=(num_tiles,),
            in_specs=[
                lhs_spec,
                pl.BlockSpec((RSC, Kp), lambda i: (0, 0)),   # weight resident across grid
                pl.BlockSpec((1, Kp), lambda i: (0, 0)),     # bias resident across grid
            ],
            out_specs=pl.BlockSpec((tile_m, Kp), lambda i: (i, 0)),
        ),
        compiler_params=pltpu.CompilerParams(
            dimension_semantics=("parallel",),          # v7x: shard M tiles over both TCs
            vmem_limit_bytes=32 * 1024 * 1024),
    )(gathered, w_mat, bias_row)

    out_features = out_padded[:N, :K]
    out_indices = indices  # submanifold: output active set == input active set
    return out_features, out_indices, P, Q


def _dense_reference(features, indices, H, W, batch_size, weight, bias,
                     stride, padding, dilation):
    """Pure-JAX reference: scatter to dense NHWC, dense conv, gather at active sites."""
    K, R, S, C = weight.shape
    dense = jnp.zeros((batch_size, H, W, C), dtype=jnp.float32)
    dense = dense.at[indices[:, 0], indices[:, 1], indices[:, 2]].set(
        features.astype(jnp.float32))
    w_hwio = jnp.transpose(weight, (1, 2, 3, 0)).astype(jnp.float32)  # [R, S, C, K]
    out = jax.lax.conv_general_dilated(
        dense, w_hwio,
        window_strides=stride,
        padding=[(padding[0], padding[0]), (padding[1], padding[1])],
        rhs_dilation=dilation,
        dimension_numbers=("NHWC", "HWIO", "NHWC"),
        precision=jax.lax.Precision.HIGHEST)
    if bias is not None:
        out = out + bias[None, None, None, :].astype(jnp.float32)
    return out[indices[:, 0], indices[:, 1], indices[:, 2]]  # [N, K]


if __name__ == "__main__":
    # Small config consistent with the module: SubMConv2d(C=4, K=8, kernel=3, pad=1)
    batch_size = 2
    C, Kc = 4, 8
    H, W = 16, 16
    R = S = 3
    stride, padding, dilation = (1, 1), (1, 1), (1, 1)

    key = jax.random.PRNGKey(0)
    k_mask, k_feat, k_w, k_b = jax.random.split(key, 4)

    # Deterministic sparse active-site pattern (~25% density).
    mask = np.array(jax.random.uniform(k_mask, (batch_size, H, W)) < 0.25)
    idx_np = np.argwhere(mask).astype(np.int32)          # [N, 3] = (b, y, x)
    indices = jnp.asarray(idx_np)
    N = idx_np.shape[0]

    features = jax.random.normal(k_feat, (N, C), dtype=jnp.float32)
    # Module's __init__ uses zero params; randomize (deterministically) for a real test.
    weight = jax.random.normal(k_w, (Kc, R, S, C), dtype=jnp.float32) * 0.1
    bias = jax.random.normal(k_b, (Kc,), dtype=jnp.float32) * 0.1

    out_feats, out_idx, P, Q = submconv2d_pallas(
        features, indices, H, W, batch_size, weight, bias,
        stride=stride, padding=padding, dilation=dilation)
    out_feats = jax.block_until_ready(out_feats)

    # Tight check against a reference computed on the same bf16-rounded operands
    # (the kernel streams features/weights in bf16, accumulates in f32).
    feats_r = features.astype(jnp.bfloat16).astype(jnp.float32)
    weight_r = weight.astype(jnp.bfloat16).astype(jnp.float32)
    ref_r = _dense_reference(feats_r, indices, H, W, batch_size, weight_r, bias,
                             stride, padding, dilation)
    np.testing.assert_allclose(np.asarray(out_feats), np.asarray(ref_r),
                               rtol=1e-4, atol=1e-4)

    # Loose check against the pure-f32 reference (bf16 input-rounding tolerance).
    ref_f32 = _dense_reference(features, indices, H, W, batch_size, weight, bias,
                               stride, padding, dilation)
    np.testing.assert_allclose(np.asarray(out_feats), np.asarray(ref_f32),
                               rtol=5e-2, atol=5e-2)

    assert (P, Q) == (H, W)
    assert out_idx.shape == indices.shape

    print("KERNEL_OK")
</pallas_src>

<mosaic_0001>
module attributes {stable_mosaic.version = 11 : i64} {
  func.func @_submconv_matmul_kernel(%arg0: i32, %arg1: memref<152x36xbf16, #tpu.memory_space<vmem>>, %arg2: memref<36x128xbf16, #tpu.memory_space<vmem>>, %arg3: memref<1x128xf32, #tpu.memory_space<vmem>>, %arg4: memref<152x128xf32, #tpu.memory_space<vmem>>) attributes {dimension_semantics = [#tpu.dimension_semantics<parallel>], iteration_bounds = array<i64: 1>, scalar_prefetch = 0 : i64, scratch_operands = 0 : i64, tpu.core_type = #tpu.core_type<tc>, window_params = [{transform_indices = @transform_0, window_bounds = array<i64: 152, 36>}, {pipeline_mode = #tpu.pipeline_mode<synchronous>, transform_indices = @transform_1, window_bounds = array<i64: 36, 128>}, {pipeline_mode = #tpu.pipeline_mode<synchronous>, transform_indices = @transform_2, window_bounds = array<i64: 1, 128>}, {transform_indices = @transform_3, window_bounds = array<i64: 152, 128>}]} {
    %c0 = arith.constant 0 : index
    %c0_0 = arith.constant 0 : index
    %0 = vector.load %arg1[%c0, %c0_0] : memref<152x36xbf16, #tpu.memory_space<vmem>>, vector<152x36xbf16>
    %c0_1 = arith.constant 0 : index
    %c0_2 = arith.constant 0 : index
    %1 = vector.load %arg2[%c0_1, %c0_2] : memref<36x128xbf16, #tpu.memory_space<vmem>>, vector<36x128xbf16>
    %cst = arith.constant dense<0.000000e+00> : vector<152x128xf32>
    %2 = tpu.matmul %0, %1, %cst {dimension_numbers = #tpu.dot_dimension_numbers<[1], [0], [0], [1], [0, 0, 1, 1], [], []>} : vector<152x36xbf16>, vector<36x128xbf16>, vector<152x128xf32> -> vector<152x128xf32>
    %c0_3 = arith.constant 0 : index
    %c0_4 = arith.constant 0 : index
    %3 = vector.load %arg3[%c0_3, %c0_4] : memref<1x128xf32, #tpu.memory_space<vmem>>, vector<1x128xf32>
    %4 = vector.broadcast %3 : vector<1x128xf32> to vector<152x128xf32>
    %5 = arith.addf %2, %4 : vector<152x128xf32>
    %c0_5 = arith.constant 0 : index
    %c0_6 = arith.constant 0 : index
    %6 = vector.load %arg4[%c0_5, %c0_6] : memref<152x128xf32, #tpu.memory_space<vmem>>, vector<152x128xf32>
    tpu.vector_store %arg4[%c0_5, %c0_6], %5 {strides = array<i32>} : memref<152x128xf32, #tpu.memory_space<vmem>>, vector<152x128xf32>,
    return
  }
  func.func @transform_0(%arg0: i32) -> (i32, i32) {
    %c0_i32 = arith.constant 0 : i32
    %c0_i32_0 = arith.constant 0 : i32
    return %arg0, %c0_i32 : i32, i32
  }
  func.func @transform_1(%arg0: i32) -> (i32, i32) {
    %c0_i32 = arith.constant 0 : i32
    %c0_i32_0 = arith.constant 0 : i32
    %c0_i32_1 = arith.constant 0 : i32
    return %c0_i32, %c0_i32_0 : i32, i32
  }
  func.func @transform_2(%arg0: i32) -> (i32, i32) {
    %c0_i32 = arith.constant 0 : i32
    %c0_i32_0 = arith.constant 0 : i32
    %c0_i32_1 = arith.constant 0 : i32
    return %c0_i32, %c0_i32_0 : i32, i32
  }
  func.func @transform_3(%arg0: i32) -> (i32, i32) {
    %c0_i32 = arith.constant 0 : i32
    %c0_i32_0 = arith.constant 0 : i32
    return %arg0, %c0_i32 : i32, i32
  }
}

</mosaic_0001>

<llo_original>
// kernel: tpu_custom_call.1
$region0: #{tpu_custom_call.1}
  #allocation0 [shape = 'u32[]', space=smem, size = 0x4, offset = 0x4, fixed_abs, tag = 'smem constant byte address 0x4 - core index']
  #allocation1 [shape = 'u32[72,128]{1,0:T(1,128)}', space=vmem, size = 0x9000, scoped, tag = 'internal scratch']
  %s0 = inlined_call_operand.vmem [shape: bf16[152,36], index: 0, kind: input, shape index: {}]
  %s1 = inlined_call_operand.vmem [shape: bf16[36,128], index: 1, kind: input, shape index: {}]
  %s2 = inlined_call_operand.vmem [shape: f32[1,128], index: 2, kind: input, shape index: {}]
  %s3 = inlined_call_operand.hbm [shape: f32[152,128], index: 3, kind: output, shape index: {}]
  %s4 = sld [smem:[#allocation0]]
  $region22: #{tpu_custom_call.1} parent=0
    _
  %s6 = ssub.s32 1, %s4
  %s7 = scalar_select 0, %s6, %s4
  $region1: #{tpu_custom_call.1} parent=0
    #allocation2 [shape = 'u8[77824]{0}', space=vmem, size = 0x13000, scoped, tag = 'output window, operand 0, single buffered']
    #allocation3 [shape = 's32[1]{0}', space=sflag, size = 0x4, scoped, tag = 'scoped memory for tpu_custom_call.1']
    %8 = vsyncpa [#allocation3], 0
    // Predicated region
    $region2: #{tpu_custom_call.1} parent=1 // pred_check
      _
    $region3: #{tpu_custom_call.1} parent=1 // pred_check_branch
      %10 = sbr.rel (0) target = $region5
    $region4: #{tpu_custom_call.1} parent=1 // pred_region
      _
    $region5: #{tpu_custom_call.1} parent=1 // pred_fallthru
      _
    // Predicated region
    $region6: #{tpu_custom_call.1} parent=1 // pred_check
      _
    $region7: #{tpu_custom_call.1} parent=1 // pred_check_branch
      %12 = sbr.rel (0) target = $region9
    $region8: #{tpu_custom_call.1} parent=1 // pred_region
      _
    $region9: #{tpu_custom_call.1} parent=1 // pred_fallthru
      _
    // Predicated region
    $region10: #{tpu_custom_call.1} parent=1 // pred_check
      _
    $region11: #{tpu_custom_call.1} parent=1 // pred_check_branch
      %14 = sbr.rel (0) target = $region13
    $region12: #{tpu_custom_call.1} parent=1 // pred_region
      _
    $region13: #{tpu_custom_call.1} parent=1 // pred_fallthru
      _
    %v16 = vld [vmem:[%s0] sm:$0xf]
    %v17 = vld [vmem:[%s0 + $0x4] sm:$0xf]
    %v18 = vld [vmem:[%s0 + $0x8] sm:$0xf]
    %v19 = vld [vmem:[%s0 + $0xc] sm:$0xf]
    %v20 = vld [vmem:[%s0 + $0x10] sm:$0xf]
    %v21 = vld [vmem:[%s0 + $0x14] sm:$0xf]
    %v22 = vld [vmem:[%s0 + $0x18] sm:$0xf]
    %v23 = vld [vmem:[%s0 + $0x1c] sm:$0xf]
    %v24 = vld [vmem:[%s0 + $0x20] sm:$0xf]
    %v25 = vld [vmem:[%s0 + $0x24] sm:$0xf]
    %v26 = vld [vmem:[%s0 + $0x28] sm:$0xf]
    %v27 = vld [vmem:[%s0 + $0x2c] sm:$0xf]
    %v28 = vld [vmem:[%s0 + $0x30] sm:$0xf]
    %v29 = vld [vmem:[%s0 + $0x34] sm:$0xf]
    %v30 = vld [vmem:[%s0 + $0x38] sm:$0xf]
    %v31 = vld [vmem:[%s0 + $0x3c] sm:$0xf]
    %v32 = vld [vmem:[%s0 + $0x40] sm:$0xf]
    %v33 = vld [vmem:[%s0 + $0x44] sm:$0xf]
    %v34 = vld [vmem:[%s0 + $0x48] sm:$0xf]
    %v35 = vld [vmem:[%s1] sm:$0xf]
    %v36 = vld [vmem:[%s1 + $0x4] sm:$0xf]
    %v37 = vld [vmem:[%s1 + $0x8] sm:$0xf]
    %v38 = vld [vmem:[%s1 + $0xc] sm:$0xf]
    %v39 = vld [vmem:[%s1 + $0x10] sm:$0x3]
    %v40 = vld [vmem:[%s2] sm:$0x1]
    %v42 = vperm.slane %v40, 0
    %v63 = vunpack.c.l.b16 %v16
    %v64 = vunpack.c.l.b16 %v17
    %v65 = vunpack.c.l.b16 %v18
    %v66 = vunpack.c.l.b16 %v19
    %v67 = vunpack.c.l.b16 %v20
    %v68 = vunpack.c.l.b16 %v21
    %v69 = vunpack.c.l.b16 %v22
    %v70 = vunpack.c.l.b16 %v23
    %v71 = vunpack.c.l.b16 %v24
    %v72 = vunpack.c.l.b16 %v25
    %v73 = vunpack.c.l.b16 %v26
    %v74 = vunpack.c.l.b16 %v27
    %v75 = vunpack.c.l.b16 %v28
    %v76 = vunpack.c.l.b16 %v29
    %v77 = vunpack.c.l.b16 %v30
    %v78 = vunpack.c.l.b16 %v31
    %v79 = vunpack.c.l.b16 %v32
    %v80 = vunpack.c.l.b16 %v33
    %v81 = vunpack.c.l.b16 %v34
    %v82 = vpack.c.b16 %v64, %v63
    %v83 = vpack.c.b16 %v66, %v65
    %v84 = vpack.c.b16 %v68, %v67
    %v85 = vpack.c.b16 %v70, %v69
    %v86 = vpack.c.b16 %v72, %v71
    %v87 = vpack.c.b16 %v74, %v73
    %v88 = vpack.c.b16 %v76, %v75
    %v89 = vpack.c.b16 %v78, %v77
    %v90 = vpack.c.b16 %v80, %v79
    %v91 = vpack.c.b16 %v81, %v81
    %v97 = vunpack.c.l.b16 %v35
    %v98 = vunpack.c.l.b16 %v36
    %v99 = vunpack.c.l.b16 %v37
    %v100 = vunpack.c.l.b16 %v38
    %v101 = vunpack.c.l.b16 %v39
    %v102 = vpack.c.b16 %v98, %v97
    %v103 = vpack.c.b16 %v100, %v99
    %v104 = vpack.c.b16 %v101, %v101
    %vm107 = vcmask 293888
    %v109 = vsel %vm107, %v82, 0
    %v112 = vsel %vm107, %v83, 0
    %v115 = vsel %vm107, %v84, 0
    %v118 = vsel %vm107, %v85, 0
    %v121 = vsel %vm107, %v86, 0
    %v124 = vsel %vm107, %v87, 0
    %v127 = vsel %vm107, %v88, 0
    %v130 = vsel %vm107, %v89, 0
    %v133 = vsel %vm107, %v90, 0
    %v136 = vsel %vm107, %v91, 0
    %vm138 = vcmask 1041408
    %v140 = vsel %vm138, %v104, 0
    %142 = vmatpush.bf16.msra.mxu0 0
    %143 = vmatpush.bf16.msra.mxu0 0
    %144 = vmatpush.bf16.msra.mxu0 0
    %145 = vmatpush.bf16.msra.mxu0 0
    %146 = vmatpush.bf16.msra.mxu0 0
    %147 = vmatpush.bf16.msra.mxu0 %v140
    %148 = vmatpush.bf16.msra.mxu0 %v103
    %149 = vmatpush.bf16.msra.mxu0 %v102
    %150 = vmatmul.bf16.gmra.mxu0 %v109
    %v151 = vpop.f32.mrf.mxu0
    %v152 = vadd.f32 %v42, %v151
    %v153 = vpop.f32.mrf.mxu0
    %v154 = vadd.f32 %v42, %v153
    %155 = vmatmul.bf16.gmra.mxu0 %v112
    %v156 = vpop.f32.mrf.mxu0
    %v157 = vadd.f32 %v42, %v156
    %v158 = vpop.f32.mrf.mxu0
    %v159 = vadd.f32 %v42, %v158
    %160 = vmatmul.bf16.gmra.mxu0 %v115
    %v161 = vpop.f32.mrf.mxu0
    %v162 = vadd.f32 %v42, %v161
    %v163 = vpop.f32.mrf.mxu0
    %v164 = vadd.f32 %v42, %v163
    %165 = vmatmul.bf16.gmra.mxu0 %v118
    %v166 = vpop.f32.mrf.mxu0
    %v167 = vadd.f32 %v42, %v166
    %v168 = vpop.f32.mrf.mxu0
    %v169 = vadd.f32 %v42, %v168
    %170 = vmatmul.bf16.gmra.mxu0 %v121
    %v171 = vpop.f32.mrf.mxu0
    %v172 = vadd.f32 %v42, %v171
    %v173 = vpop.f32.mrf.mxu0
    %v174 = vadd.f32 %v42, %v173
    %175 = vmatmul.bf16.gmra.mxu0 %v124
    %v176 = vpop.f32.mrf.mxu0
    %v177 = vadd.f32 %v42, %v176
    %v178 = vpop.f32.mrf.mxu0
    %v179 = vadd.f32 %v42, %v178
    %180 = vmatmul.bf16.gmra.mxu0 %v127
    %v181 = vpop.f32.mrf.mxu0
    %v182 = vadd.f32 %v42, %v181
    %v183 = vpop.f32.mrf.mxu0
    %v184 = vadd.f32 %v42, %v183
    %185 = vmatmul.bf16.gmra.mxu0 %v130
    %v186 = vpop.f32.mrf.mxu0
    %v187 = vadd.f32 %v42, %v186
    %v188 = vpop.f32.mrf.mxu0
    %v189 = vadd.f32 %v42, %v188
    %190 = vmatmul.bf16.gmra.mxu0 %v133
    %v191 = vpop.f32.mrf.mxu0
    %v192 = vadd.f32 %v42, %v191
    %v193 = vpop.f32.mrf.mxu0
    %v194 = vadd.f32 %v42, %v193
    %195 = vmatmul.bf16.gmra.mxu0 %v136
    %v196 = vpop.f32.mrf.mxu0
    %v197 = vadd.f32 %v42, %v196
    %v198 = vpop.f32.mrf.mxu0
    %199 = vdwg.mxu0
    %200 = vst [vmem:[#allocation2] sm:$0xff] %v152
    %201 = vst [vmem:[#allocation2 + $0x8] sm:$0xff] %v154
    %202 = vst [vmem:[#allocation2 + $0x10] sm:$0xff] %v157
    %203 = vst [vmem:[#allocation2 + $0x18] sm:$0xff] %v159
    %204 = vst [vmem:[#allocation2 + $0x20] sm:$0xff] %v162
    %205 = vst [vmem:[#allocation2 + $0x28] sm:$0xff] %v164
    %206 = vst [vmem:[#allocation2 + $0x30] sm:$0xff] %v167
    %207 = vst [vmem:[#allocation2 + $0x38] sm:$0xff] %v169
    %208 = vst [vmem:[#allocation2 + $0x40] sm:$0xff] %v172
    %209 = vst [vmem:[#allocation2 + $0x48] sm:$0xff] %v174
    %210 = vst [vmem:[#allocation2 + $0x50] sm:$0xff] %v177
    %211 = vst [vmem:[#allocation2 + $0x58] sm:$0xff] %v179
    %212 = vst [vmem:[#allocation2 + $0x60] sm:$0xff] %v182
    %213 = vst [vmem:[#allocation2 + $0x68] sm:$0xff] %v184
    %214 = vst [vmem:[#allocation2 + $0x70] sm:$0xff] %v187
    %215 = vst [vmem:[#allocation2 + $0x78] sm:$0xff] %v189
    %216 = vst [vmem:[#allocation2 + $0x80] sm:$0xff] %v192
    %217 = vst [vmem:[#allocation2 + $0x88] sm:$0xff] %v194
    %218 = vst [vmem:[#allocation2 + $0x90] sm:$0xff] %v197
    // Predicated region
    $region14: #{tpu_custom_call.1} parent=1 // pred_check
      _
    $region15: #{tpu_custom_call.1} parent=1 // pred_check_branch
      %220 = sbr.rel (0) target = $region17
    $region16: #{tpu_custom_call.1} parent=1 // pred_region
      %222 = vsyncadd [#allocation3], 0
      %s223 = sshll.u32 [#allocation2], 4
      %s224 = int_to_ptr.vmem [resolvable:$true] %s223
      %s225 = sshll.u32 %s3, 4
      %s226 = int_to_ptr.hbm [resolvable:$true] %s225
      %231 = dma.vmem_to_hbm [thread:$0]  %s224, 2432, %s226, [#allocation3], 128, 128, 8
    $region17: #{tpu_custom_call.1} parent=1 // pred_fallthru
      _
    // Predicated region
    $region18: #{tpu_custom_call.1} parent=1 // pred_check
      _
    $region19: #{tpu_custom_call.1} parent=1 // pred_check_branch
      %233 = sbr.rel (0) target = $region21
    $region20: #{tpu_custom_call.1} parent=1 // pred_region
      %235 = dma.done [#allocation3], 2432
    $region21: #{tpu_custom_call.1} parent=1 // pred_fallthru
      _
    %236 = vsyncpa [#allocation3], 1

</llo_original>
